<compile_context>
chip_gen: v7x
topology: tpu7x:2x2x1
jax: 0.10.0
libtpu: 0.0.40
codegen_flags: <defaults>
</compile_context>

<pallas_src>
import functools

import jax
import jax.numpy as jnp
from jax.experimental import pallas as pl
from jax.experimental.pallas import tpu as pltpu


def _pad_kernel(x_ref, o_ref, *, h: int, w: int):
    # x_ref: (B, H, W) VMEM tile, o_ref: (B, T, T) VMEM tile.
    b, t, _ = o_ref.shape
    dt = o_ref.dtype
    # Disjoint writes that cover the whole output block exactly once.
    o_ref[:, :h, :w] = x_ref[...]
    if w < t:  # right zero strip
        o_ref[:, :h, w:] = jnp.zeros((b, h, t - w), dt)
    if h < t:  # bottom zero strip
        o_ref[:, h:, :] = jnp.zeros((b, t - h, t), dt)


def _round_up(x: int, m: int) -> int:
    return (x + m - 1) // m * m


def _vmem_bytes_per_image(h: int, w: int, t: int, dtype) -> int:
    # Per-image VMEM footprint of one input tile + one output tile in the
    # native (sublane, 128-lane) tiled layout (sub-32-bit dtypes pack sublanes).
    itemsize = jnp.dtype(dtype).itemsize
    sublane = max(8, 32 // max(1, itemsize))  # 8 (f32) / 16 (bf16) / 32 (int8)
    lane = 128
    in_b = _round_up(h, sublane) * _round_up(w, lane) * itemsize
    out_b = _round_up(t, sublane) * _round_up(t, lane) * itemsize
    return in_b + out_b


def pad_to_square(image: jax.Array, target_size: int,
                  vmem_budget_bytes: int = 12 * 1024 * 1024) -> jax.Array:
    """F.pad(image, (0, T - w, 0, T - h), value=0) for NCHW input."""
    n, c, h, w = image.shape
    t = target_size
    assert h <= t and w <= t, "target_size must be >= input spatial dims"

    nc = n * c
    x = image.reshape(nc, h, w)  # contiguous view; free on the XLA side

    # Batch as many images per grid step as fit the double-buffered budget.
    per_img = _vmem_bytes_per_image(h, w, t, image.dtype)
    b = max(1, min(nc, vmem_budget_bytes // (2 * per_img)))
    # TODO(synk): for very large T (e.g. 2048 f32) a single (1, T, T) block no
    # longer fits v7x VMEM comfortably; add spatial tiling with pl.when-skipped
    # pure-pad tiles for that regime.

    grid = (pl.cdiv(nc, b),)
    kernel = functools.partial(_pad_kernel, h=h, w=w)

    out = pl.pallas_call(
        kernel,
        out_shape=jax.ShapeDtypeStruct((nc, t, t), image.dtype),
        grid_spec=pltpu.PrefetchScalarGridSpec(
            num_scalar_prefetch=0,
            grid=grid,
            in_specs=[
                # Last two block dims equal the full array dims, so the (8,128)
                # tiling constraint is satisfied for any H, W.
                pl.BlockSpec((b, h, w), lambda i: (i, 0, 0)),
            ],
            out_specs=pl.BlockSpec((b, t, t), lambda i: (i, 0, 0)),
        ),
        compiler_params=pltpu.CompilerParams(
            dimension_semantics=("parallel",),
            vmem_limit_bytes=32 * 1024 * 1024,
        ),
    )(x)

    # TODO(synk): when T < 128 the trailing T-dim under-uses vector lanes; a
    # lane-dense (NC, T*T) output layout would need an in-kernel relayout
    # (reshape/concat), which is left out here to keep lowering robust.
    return out.reshape(n, c, t, t)


if __name__ == "__main__":
    key = jax.random.PRNGKey(0)
    k1, k2 = jax.random.split(key)

    # Case 1: small, single grid step (all images batched into one block).
    N, C, H, W = 2, 3, 12, 10
    TARGET = 16
    x = jax.random.normal(k1, (N, C, H, W), dtype=jnp.float32)
    out = jax.block_until_ready(pad_to_square(x, TARGET))
    ref = jnp.pad(x, ((0, 0), (0, 0), (0, TARGET - H), (0, TARGET - W)))
    assert out.shape == (N, C, TARGET, TARGET)
    assert out.dtype == x.dtype
    assert jnp.array_equal(out, ref)

    # Case 2: more images with a tiny VMEM budget -> multi-step grid including
    # a ragged final block (exercises the batched pipeline path).
    N2, C2, H2, W2, T2 = 3, 5, 7, 9, 16
    x2 = jax.random.normal(k2, (N2, C2, H2, W2), dtype=jnp.float32)
    out2 = jax.block_until_ready(
        pad_to_square(x2, T2, vmem_budget_bytes=100 * 1024))
    ref2 = jnp.pad(x2, ((0, 0), (0, 0), (0, T2 - H2), (0, T2 - W2)))
    assert out2.shape == (N2, C2, T2, T2)
    assert jnp.array_equal(out2, ref2)

    print("KERNEL_OK")
</pallas_src>

<mosaic_0001>
module attributes {stable_mosaic.version = 11 : i64} {
  func.func @_pad_kernel(%arg0: i32, %arg1: memref<6x12x10xf32, #tpu.memory_space<vmem>>, %arg2: memref<6x16x16xf32, #tpu.memory_space<vmem>>) attributes {dimension_semantics = [#tpu.dimension_semantics<parallel>], iteration_bounds = array<i64: 1>, scalar_prefetch = 0 : i64, scratch_operands = 0 : i64, tpu.core_type = #tpu.core_type<tc>, window_params = [{transform_indices = @transform_0, window_bounds = array<i64: 6, 12, 10>}, {transform_indices = @transform_1, window_bounds = array<i64: 6, 16, 16>}]} {
    %c0 = arith.constant 0 : index
    %c0_0 = arith.constant 0 : index
    %c0_1 = arith.constant 0 : index
    %0 = vector.load %arg1[%c0, %c0_0, %c0_1] : memref<6x12x10xf32, #tpu.memory_space<vmem>>, vector<6x12x10xf32>
    %c0_2 = arith.constant 0 : index
    %c0_3 = arith.constant 0 : index
    %c0_4 = arith.constant 0 : index
    %1 = vector.load %arg2[%c0_2, %c0_3, %c0_4] : memref<6x16x16xf32, #tpu.memory_space<vmem>>, vector<6x12x10xf32>
    tpu.vector_store %arg2[%c0_2, %c0_3, %c0_4], %0 {strides = array<i32>} : memref<6x16x16xf32, #tpu.memory_space<vmem>>, vector<6x12x10xf32>,
    %cst = arith.constant 0.000000e+00 : f32
    %2 = vector.broadcast %cst : f32 to vector<6x12x6xf32>
    %c0_5 = arith.constant 0 : index
    %c0_6 = arith.constant 0 : index
    %c10 = arith.constant 10 : index
    %3 = vector.load %arg2[%c0_5, %c0_6, %c10] : memref<6x16x16xf32, #tpu.memory_space<vmem>>, vector<6x12x6xf32>
    tpu.vector_store %arg2[%c0_5, %c0_6, %c10], %2 {strides = array<i32>} : memref<6x16x16xf32, #tpu.memory_space<vmem>>, vector<6x12x6xf32>,
    %cst_7 = arith.constant 0.000000e+00 : f32
    %4 = vector.broadcast %cst_7 : f32 to vector<6x4x16xf32>
    %c0_8 = arith.constant 0 : index
    %c12 = arith.constant 12 : index
    %c0_9 = arith.constant 0 : index
    %5 = vector.load %arg2[%c0_8, %c12, %c0_9] : memref<6x16x16xf32, #tpu.memory_space<vmem>>, vector<6x4x16xf32>
    tpu.vector_store %arg2[%c0_8, %c12, %c0_9], %4 {strides = array<i32>} : memref<6x16x16xf32, #tpu.memory_space<vmem>>, vector<6x4x16xf32>,
    return
  }
  func.func @transform_0(%arg0: i32) -> (i32, i32, i32) {
    %c0_i32 = arith.constant 0 : i32
    %c0_i32_0 = arith.constant 0 : i32
    %c0_i32_1 = arith.constant 0 : i32
    return %arg0, %c0_i32, %c0_i32_0 : i32, i32, i32
  }
  func.func @transform_1(%arg0: i32) -> (i32, i32, i32) {
    %c0_i32 = arith.constant 0 : i32
    %c0_i32_0 = arith.constant 0 : i32
    %c0_i32_1 = arith.constant 0 : i32
    return %arg0, %c0_i32, %c0_i32_0 : i32, i32, i32
  }
}

</mosaic_0001>

<llo_original>
// kernel: tpu_custom_call.1
$region0: #{tpu_custom_call.1}
  #allocation0 [shape = 'u32[]', space=smem, size = 0x4, offset = 0x4, fixed_abs, tag = 'smem constant byte address 0x4 - core index']
  #allocation1 [shape = 'u32[144,128]{1,0:T(1,128)}', space=vmem, size = 0x12000, scoped, tag = 'internal scratch']
  %s0 = inlined_call_operand.vmem [shape: f32[6,12,10], index: 0, kind: input, shape index: {}]
  %s1 = inlined_call_operand.hbm [shape: f32[6,16,16], index: 1, kind: output, shape index: {}]
  %s2 = sld [smem:[#allocation0]]
  $region14: #{tpu_custom_call.1} parent=0
    _
  %s4 = ssub.s32 1, %s2
  %s5 = scalar_select 0, %s4, %s2
  $region1: #{tpu_custom_call.1} parent=0
    #allocation2 [shape = 'u8[49152]{0}', space=vmem, size = 0xc000, scoped, tag = 'output window, operand 0, single buffered']
    #allocation3 [shape = 's32[1]{0}', space=sflag, size = 0x4, scoped, tag = 'scoped memory for tpu_custom_call.1']
    %6 = vsyncpa [#allocation3], 0
    // Predicated region
    $region2: #{tpu_custom_call.1} parent=1 // pred_check
      _
    $region3: #{tpu_custom_call.1} parent=1 // pred_check_branch
      %8 = sbr.rel (0) target = $region5
    $region4: #{tpu_custom_call.1} parent=1 // pred_region
      _
    $region5: #{tpu_custom_call.1} parent=1 // pred_fallthru
      _
    %v9 = vld [vmem:[%s0] sm:$0xff]
    %v10 = vld [vmem:[%s0 + $0x8] sm:$0xf]
    %v11 = vld [vmem:[%s0 + $0x10] sm:$0xff]
    %v12 = vld [vmem:[%s0 + $0x18] sm:$0xf]
    %v13 = vld [vmem:[%s0 + $0x20] sm:$0xff]
    %v14 = vld [vmem:[%s0 + $0x28] sm:$0xf]
    %v15 = vld [vmem:[%s0 + $0x30] sm:$0xff]
    %v16 = vld [vmem:[%s0 + $0x38] sm:$0xf]
    %v17 = vld [vmem:[%s0 + $0x40] sm:$0xff]
    %v18 = vld [vmem:[%s0 + $0x48] sm:$0xf]
    %v19 = vld [vmem:[%s0 + $0x50] sm:$0xff]
    %v20 = vld [vmem:[%s0 + $0x58] sm:$0xf]
    %vm21 = vcmask 80896
    %22 = vst.msk [vmem:[#allocation2] sm:$0xff] %vm21, %v9
    %vm23 = vcmask 76800
    %24 = vst.msk [vmem:[#allocation2 + $0x8] sm:$0xf] %vm23, %v10
    %25 = vst.msk [vmem:[#allocation2 + $0x10] sm:$0xff] %vm21, %v11
    %26 = vst.msk [vmem:[#allocation2 + $0x18] sm:$0xf] %vm23, %v12
    %27 = vst.msk [vmem:[#allocation2 + $0x20] sm:$0xff] %vm21, %v13
    %28 = vst.msk [vmem:[#allocation2 + $0x28] sm:$0xf] %vm23, %v14
    %29 = vst.msk [vmem:[#allocation2 + $0x30] sm:$0xff] %vm21, %v15
    %30 = vst.msk [vmem:[#allocation2 + $0x38] sm:$0xf] %vm23, %v16
    %31 = vst.msk [vmem:[#allocation2 + $0x40] sm:$0xff] %vm21, %v17
    %32 = vst.msk [vmem:[#allocation2 + $0x48] sm:$0xf] %vm23, %v18
    %33 = vst.msk [vmem:[#allocation2 + $0x50] sm:$0xff] %vm21, %v19
    %34 = vst.msk [vmem:[#allocation2 + $0x58] sm:$0xf] %vm23, %v20
    %vm35 = vcmask 130128
    %36 = vst.msk [vmem:[#allocation2] sm:$0xff] %vm35, 0.0
    %vm37 = vcmask 126032
    %38 = vst.msk [vmem:[#allocation2 + $0x8] sm:$0xf] %vm37, 0.0
    %39 = vst.msk [vmem:[#allocation2 + $0x10] sm:$0xff] %vm35, 0.0
    %40 = vst.msk [vmem:[#allocation2 + $0x18] sm:$0xf] %vm37, 0.0
    %41 = vst.msk [vmem:[#allocation2 + $0x20] sm:$0xff] %vm35, 0.0
    %42 = vst.msk [vmem:[#allocation2 + $0x28] sm:$0xf] %vm37, 0.0
    %43 = vst.msk [vmem:[#allocation2 + $0x30] sm:$0xff] %vm35, 0.0
    %44 = vst.msk [vmem:[#allocation2 + $0x38] sm:$0xf] %vm37, 0.0
    %45 = vst.msk [vmem:[#allocation2 + $0x40] sm:$0xff] %vm35, 0.0
    %46 = vst.msk [vmem:[#allocation2 + $0x48] sm:$0xf] %vm37, 0.0
    %47 = vst.msk [vmem:[#allocation2 + $0x50] sm:$0xff] %vm35, 0.0
    %48 = vst.msk [vmem:[#allocation2 + $0x58] sm:$0xf] %vm37, 0.0
    %vm49 = vcmask 125952
    %50 = vst.msk [vmem:[#allocation2 + $0xc] sm:$0xf] %vm49, 0.0
    %51 = vst.msk [vmem:[#allocation2 + $0x1c] sm:$0xf] %vm49, 0.0
    %52 = vst.msk [vmem:[#allocation2 + $0x2c] sm:$0xf] %vm49, 0.0
    %53 = vst.msk [vmem:[#allocation2 + $0x3c] sm:$0xf] %vm49, 0.0
    %54 = vst.msk [vmem:[#allocation2 + $0x4c] sm:$0xf] %vm49, 0.0
    %55 = vst.msk [vmem:[#allocation2 + $0x5c] sm:$0xf] %vm49, 0.0
    // Predicated region
    $region6: #{tpu_custom_call.1} parent=1 // pred_check
      _
    $region7: #{tpu_custom_call.1} parent=1 // pred_check_branch
      %57 = sbr.rel (0) target = $region9
    $region8: #{tpu_custom_call.1} parent=1 // pred_region
      %s59 = ssub.s32 1536, 1536
      %60 = vsyncadd [#allocation3], %s59
      %s61 = sshll.u32 [#allocation2], 4
      %s62 = int_to_ptr.vmem [resolvable:$true] %s61
      %67 = dma.vmem_to_hbm [thread:$0]  %s62, 1536, %s1, [#allocation3], 128, 128, 8
    $region9: #{tpu_custom_call.1} parent=1 // pred_fallthru
      _
    // Predicated region
    $region10: #{tpu_custom_call.1} parent=1 // pred_check
      _
    $region11: #{tpu_custom_call.1} parent=1 // pred_check_branch
      %69 = sbr.rel (0) target = $region13
    $region12: #{tpu_custom_call.1} parent=1 // pred_region
      %70 = dma.done [#allocation3], 1536
    $region13: #{tpu_custom_call.1} parent=1 // pred_fallthru
      _
    %71 = vsyncpa [#allocation3], 1

</llo_original>
